<compile_context>
chip_gen: v7x
topology: tpu7x:2x2x1
jax: 0.10.0
libtpu: 0.0.40
codegen_flags: <defaults>
</compile_context>

<pallas_src>
import math
import functools

import jax
import jax.numpy as jnp
from jax import lax
from jax.experimental import pallas as pl
from jax.experimental.pallas import tpu as pltpu

HALF_LOG_2PI = 0.5 * math.log(2.0 * math.pi)
SQRT_2PI = math.sqrt(2.0 * math.pi)


def _ll_censor_kernel(z_ref, out_ref, *, sa_dists, p_total, n,
                      block_n, chunk, num_blocks, blocks_per_core):
    core = pl.program_id(0)
    step = pl.program_id(1)
    g = core * blocks_per_core + step            # global lane-block index
    last_g = num_blocks - 1
    num_chunks = block_n // chunk

    @pl.when(step == 0)
    def _init():
        out_ref[...] = jnp.zeros_like(out_ref)   # per-core accumulator block

    def rows(r0, r1, c0):
        # Slice rows straight from the ref (never materialize the whole tile);
        # upcast here so bf16 inputs stay bf16 through the DMA.
        return z_ref[r0:r1, c0:c0 + chunk].astype(jnp.float32)

    def chunk_ll(c0):
        """Summed log-likelihood over all distributions for lanes [c0, c0+chunk)."""
        ll = jnp.zeros((1, chunk), jnp.float32)
        index_x = 0
        for index_type, (dist, num_params) in enumerate(sa_dists):
            tgt = rows(p_total + index_type, p_total + index_type + 1, c0)
            if dist == 'gaussian' or dist == 'log-normal':
                mean = rows(index_x, index_x + 1, c0)
                std = rows(index_x + 1, index_x + 2, c0)
                # divide -> EUP reciprocal; -log(sqrt(2pi)*std) = -log(std) - c
                zsc = (tgt - mean) * pl.reciprocal(std, approx=True)
                ll = ll + (-jnp.log(std) - HALF_LOG_2PI - 0.5 * zsc * zsc)
            elif dist == 'bernoulli':
                p = rows(index_x, index_x + 1, c0)
                ll = ll + tgt * jnp.log(p) + (1.0 - tgt) * jnp.log(1.0 - p)
            elif dist == 'categorical':
                p = rows(index_x, index_x + num_params, c0)      # (K, chunk)
                cls = lax.broadcasted_iota(jnp.int32, p.shape, 0)
                picked = cls == tgt.astype(jnp.int32)
                # select the picked prob, then ONE log per element (not K)
                p_sel = jnp.sum(jnp.where(picked, p, 0.0), axis=0, keepdims=True)
                ll = ll + jnp.log(p_sel)
            elif dist == 'weibull':
                alpha = rows(index_x, index_x + 1, c0)
                lam = rows(index_x + 1, index_x + 2, c0)
                log_lam = jnp.log(lam)                           # shared log
                log_ratio = jnp.log(tgt) - log_lam               # log(t/lam)
                ll = ll + (jnp.log(alpha) - log_lam
                           + (alpha - 1.0) * log_ratio
                           - jnp.exp(alpha * log_ratio))         # (t/lam)**alpha
            else:
                raise RuntimeError('Unknown distribution to compute time loss')
            # TODO(synk): check_nan_inf is a host-side assert; no in-kernel equivalent.
            index_x += num_params
        return ll

    @pl.when(g < last_g)                          # full blocks: no mask at all
    def _full_block():
        acc = jnp.zeros((1, chunk), jnp.float32)
        for c in range(num_chunks):               # unrolled, static slice starts
            acc = acc + chunk_ll(c * chunk)
        out_ref[0:1, :] += acc

    @pl.when(g == last_g)                         # last (possibly partial) block
    def _last_block():
        valid = n - last_g * block_n              # python int in (0, block_n]
        acc = jnp.zeros((1, chunk), jnp.float32)
        for c in range(num_chunks):
            c0 = c * chunk
            if c0 >= valid:
                break                             # chunk entirely past N: skip
            ll = chunk_ll(c0)
            if c0 + chunk > valid:                # boundary chunk only: mask garbage
                col = c0 + lax.broadcasted_iota(jnp.int32, (1, chunk), 1)
                ll = jnp.where(col < valid, ll, 0.0)   # select: NaN/Inf can't leak
            acc = acc + ll
        out_ref[0:1, :] += acc
    # inactive tail steps (g > last_g, clamped DMA) contribute nothing.


def log_likelihood_loss_censoring_t_e(inputs, targets, risks, dist_types, *,
                                      block_n=4096, chunk=512, num_cores=2):
    """Pallas mirror of LogLikelihoodLossWithCensoring_t_e.forward."""
    sa_dists = (tuple(dist_types), ('bernoulli', 1))
    n, p_total = inputs.shape
    assert p_total == sum(s[1] for s in sa_dists)
    assert chunk % 128 == 0 and block_n % chunk == 0 and n >= 1

    # One fused lane-dense operand: rows [0, P) = params^T, row P = time target,
    # row P+1 = event indicator.  Single DMA stream per step, no pad pass.
    # TODO(synk): cheapest of all is for the producer to emit this (P+2, N)
    # layout directly so even this transpose/concat disappears.
    z = jnp.concatenate(
        [inputs.T,
         targets.reshape(1, n).astype(inputs.dtype),
         risks.reshape(1, n).astype(inputs.dtype)], axis=0)

    num_blocks = (n + block_n - 1) // block_n
    num_cores = max(1, min(num_cores, num_blocks))
    blocks_per_core = (num_blocks + num_cores - 1) // num_cores

    kernel = functools.partial(
        _ll_censor_kernel, sa_dists=sa_dists, p_total=p_total, n=n,
        block_n=block_n, chunk=chunk, num_blocks=num_blocks,
        blocks_per_core=blocks_per_core)

    partial_sums = pl.pallas_call(
        kernel,
        out_shape=jax.ShapeDtypeStruct((num_cores * 8, chunk), jnp.float32),
        grid_spec=pltpu.PrefetchScalarGridSpec(
            num_scalar_prefetch=0,
            grid=(num_cores, blocks_per_core),
            in_specs=[pl.BlockSpec(
                (p_total + 2, block_n),
                # clamp so the tail core's extra step never DMAs out of bounds
                lambda c, i: (0, jnp.minimum(c * blocks_per_core + i,
                                             num_blocks - 1)))],
            out_specs=pl.BlockSpec((8, chunk), lambda c, i: (c, 0)),
        ),
        compiler_params=pltpu.CompilerParams(
            dimension_semantics=("parallel", "arbitrary")),
    )(z)

    # Tiny cross-core / cross-lane combine (only row 0 of each per-core block is
    # nonzero; summing the zeros is free) and the single scale by -1/N.
    return -jnp.sum(partial_sums) / jnp.float32(n)


def _reference_loss(inputs, targets, risks, dist_types):
    """Plain-JAX mirror of the PyTorch forward (sanity check)."""
    sa_dists = [tuple(dist_types), ('bernoulli', 1)]
    t2 = jnp.stack([targets, risks], axis=1)         # (N, 2)
    n = inputs.shape[0]
    total = jnp.float32(0.0)
    index_x = 0
    for i, spec in enumerate(sa_dists):
        dist, k = spec[0], spec[1]
        tgt = t2[:, i]
        if dist in ('gaussian', 'log-normal'):
            mean, std = inputs[:, index_x], inputs[:, index_x + 1]
            ll = -jnp.log(SQRT_2PI * std) - 0.5 * ((tgt - mean) / std) ** 2
        elif dist == 'bernoulli':
            p = inputs[:, index_x]
            ll = tgt * jnp.log(p) + (1.0 - tgt) * jnp.log(1.0 - p)
        elif dist == 'categorical':
            p = inputs[:, index_x:index_x + k]
            oh = jax.nn.one_hot(tgt.astype(jnp.int32), k, dtype=jnp.float32)
            ll = jnp.log(p) * oh
        elif dist == 'weibull':
            a, lam = inputs[:, index_x], inputs[:, index_x + 1]
            r = tgt / lam
            ll = jnp.log(a / lam) + (a - 1.0) * jnp.log(r) - r ** a
        else:
            raise RuntimeError('Unknown distribution to compute time loss')
        total = total - jnp.sum(ll) / n
        index_x += k
    return total


if __name__ == "__main__":
    key = jax.random.PRNGKey(0)
    N = 200                    # not a multiple of the lane tile -> exercises masking
    u = lambda k, shape, lo, hi: jax.random.uniform(k, shape, jnp.float32, lo, hi)

    def check(name, dist_types, inputs, targets, risks):
        loss = jax.block_until_ready(
            log_likelihood_loss_censoring_t_e(inputs, targets, risks, dist_types))
        ref = jax.block_until_ready(
            _reference_loss(inputs, targets, risks, dist_types))
        assert jnp.isfinite(loss), f"{name}: kernel produced non-finite loss"
        assert abs(float(loss) - float(ref)) <= 2e-3 * (abs(float(ref)) + 1.0), (
            f"{name}: mismatch kernel={float(loss)} ref={float(ref)}")

    # --- weibull time distribution + censoring bernoulli (typical use) ---
    ks = jax.random.split(key, 8)
    inputs_w = jnp.concatenate([
        u(ks[0], (N, 1), 0.5, 2.0),     # weibull alpha
        u(ks[1], (N, 1), 0.5, 2.0),     # weibull lambda
        u(ks[2], (N, 1), 0.05, 0.95),   # event bernoulli p
    ], axis=1)
    targets_w = u(ks[3], (N,), 0.1, 3.0)
    risks_w = jax.random.bernoulli(ks[4], 0.6, (N,)).astype(jnp.float32)
    check("weibull", ('weibull', 2), inputs_w, targets_w, risks_w)

    # --- gaussian time distribution ---
    ks = jax.random.split(jax.random.fold_in(key, 1), 8)
    inputs_g = jnp.concatenate([
        u(ks[0], (N, 1), -1.0, 1.0),    # mean
        u(ks[1], (N, 1), 0.5, 1.5),     # std
        u(ks[2], (N, 1), 0.05, 0.95),   # event bernoulli p
    ], axis=1)
    targets_g = u(ks[3], (N,), -1.0, 1.0)
    risks_g = jax.random.bernoulli(ks[4], 0.5, (N,)).astype(jnp.float32)
    check("gaussian", ('gaussian', 2), inputs_g, targets_g, risks_g)

    # --- categorical time distribution (4 classes) ---
    ks = jax.random.split(jax.random.fold_in(key, 2), 8)
    inputs_c = jnp.concatenate([
        u(ks[0], (N, 4), 0.1, 1.0),     # categorical probs
        u(ks[1], (N, 1), 0.05, 0.95),   # event bernoulli p
    ], axis=1)
    targets_c = jax.random.randint(ks[2], (N,), 0, 4).astype(jnp.float32)
    risks_c = jax.random.bernoulli(ks[3], 0.5, (N,)).astype(jnp.float32)
    check("categorical", ('categorical', 4), inputs_c, targets_c, risks_c)

    print("KERNEL_OK")
</pallas_src>

<mosaic_0001>
module attributes {stable_mosaic.version = 11 : i64} {
  func.func @_ll_censor_kernel(%arg0: i32, %arg1: i32, %arg2: memref<5x4096xf32, #tpu.memory_space<vmem>>, %arg3: memref<8x512xf32, #tpu.memory_space<vmem>>) attributes {dimension_semantics = [#tpu.dimension_semantics<parallel>, #tpu.dimension_semantics<arbitrary>], iteration_bounds = array<i64: 1, 1>, scalar_prefetch = 0 : i64, scratch_operands = 0 : i64, tpu.core_type = #tpu.core_type<tc>, window_params = [{transform_indices = @transform_0, window_bounds = array<i64: 5, 4096>}, {transform_indices = @transform_1, window_bounds = array<i64: 8, 512>}]} {
    %c1_i32 = arith.constant 1 : i32
    %0 = arith.muli %arg0, %c1_i32 : i32
    %1 = arith.addi %0, %arg1 : i32
    %c0_i32 = arith.constant 0 : i32
    %2 = arith.cmpi eq, %arg1, %c0_i32 : i32
    %3 = arith.extui %2 : i1 to i32
    %c0_i32_0 = arith.constant 0 : i32
    %4 = arith.cmpi ne, %3, %c0_i32_0 : i32
    scf.if %4 {
      %cst = arith.constant 0.000000e+00 : f32
      %11 = vector.broadcast %cst : f32 to vector<8x512xf32>
      %c0 = arith.constant 0 : index
      %c0_5 = arith.constant 0 : index
      %12 = vector.load %arg3[%c0, %c0_5] : memref<8x512xf32, #tpu.memory_space<vmem>>, vector<8x512xf32>
      tpu.vector_store %arg3[%c0, %c0_5], %11 {strides = array<i32>} : memref<8x512xf32, #tpu.memory_space<vmem>>, vector<8x512xf32>,
    } else {
    }
    %c0_i32_1 = arith.constant 0 : i32
    %5 = arith.cmpi slt, %1, %c0_i32_1 : i32
    %6 = arith.extui %5 : i1 to i32
    %c0_i32_2 = arith.constant 0 : i32
    %7 = arith.cmpi ne, %6, %c0_i32_2 : i32
    scf.if %7 {
      %cst = arith.constant 0.000000e+00 : f32
      %11 = vector.broadcast %cst : f32 to vector<1x512xf32>
      %cst_5 = arith.constant 0.000000e+00 : f32
      %12 = vector.broadcast %cst_5 : f32 to vector<1x512xf32>
      %c3 = arith.constant 3 : index
      %c0 = arith.constant 0 : index
      %13 = vector.load %arg2[%c3, %c0] : memref<5x4096xf32, #tpu.memory_space<vmem>>, vector<1x512xf32>
      %c0_6 = arith.constant 0 : index
      %c0_7 = arith.constant 0 : index
      %14 = vector.load %arg2[%c0_6, %c0_7] : memref<5x4096xf32, #tpu.memory_space<vmem>>, vector<1x512xf32>
      %c1 = arith.constant 1 : index
      %c0_8 = arith.constant 0 : index
      %15 = vector.load %arg2[%c1, %c0_8] : memref<5x4096xf32, #tpu.memory_space<vmem>>, vector<1x512xf32>
      %16 = math.log %15 : vector<1x512xf32>
      %17 = math.log %13 : vector<1x512xf32>
      %18 = arith.subf %17, %16 : vector<1x512xf32>
      %19 = math.log %14 : vector<1x512xf32>
      %20 = arith.subf %19, %16 : vector<1x512xf32>
      %cst_9 = arith.constant 1.000000e+00 : f32
      %21 = vector.broadcast %cst_9 : f32 to vector<1x512xf32>
      %22 = arith.subf %14, %21 : vector<1x512xf32>
      %23 = arith.mulf %22, %18 : vector<1x512xf32>
      %24 = arith.addf %20, %23 : vector<1x512xf32>
      %25 = arith.mulf %14, %18 : vector<1x512xf32>
      %26 = math.exp %25 : vector<1x512xf32>
      %27 = arith.subf %24, %26 : vector<1x512xf32>
      %28 = arith.addf %12, %27 : vector<1x512xf32>
      %c4 = arith.constant 4 : index
      %c0_10 = arith.constant 0 : index
      %29 = vector.load %arg2[%c4, %c0_10] : memref<5x4096xf32, #tpu.memory_space<vmem>>, vector<1x512xf32>
      %c2 = arith.constant 2 : index
      %c0_11 = arith.constant 0 : index
      %30 = vector.load %arg2[%c2, %c0_11] : memref<5x4096xf32, #tpu.memory_space<vmem>>, vector<1x512xf32>
      %31 = math.log %30 : vector<1x512xf32>
      %32 = arith.mulf %29, %31 : vector<1x512xf32>
      %33 = arith.addf %28, %32 : vector<1x512xf32>
      %cst_12 = arith.constant 1.000000e+00 : f32
      %34 = vector.broadcast %cst_12 : f32 to vector<1x512xf32>
      %35 = arith.subf %34, %29 : vector<1x512xf32>
      %cst_13 = arith.constant 1.000000e+00 : f32
      %36 = vector.broadcast %cst_13 : f32 to vector<1x512xf32>
      %37 = arith.subf %36, %30 : vector<1x512xf32>
      %38 = math.log %37 : vector<1x512xf32>
      %39 = arith.mulf %35, %38 : vector<1x512xf32>
      %40 = arith.addf %33, %39 : vector<1x512xf32>
      %41 = arith.addf %11, %40 : vector<1x512xf32>
      %cst_14 = arith.constant 0.000000e+00 : f32
      %42 = vector.broadcast %cst_14 : f32 to vector<1x512xf32>
      %c3_15 = arith.constant 3 : index
      %c512 = arith.constant 512 : index
      %43 = vector.load %arg2[%c3_15, %c512] : memref<5x4096xf32, #tpu.memory_space<vmem>>, vector<1x512xf32>
      %c0_16 = arith.constant 0 : index
      %c512_17 = arith.constant 512 : index
      %44 = vector.load %arg2[%c0_16, %c512_17] : memref<5x4096xf32, #tpu.memory_space<vmem>>, vector<1x512xf32>
      %c1_18 = arith.constant 1 : index
      %c512_19 = arith.constant 512 : index
      %45 = vector.load %arg2[%c1_18, %c512_19] : memref<5x4096xf32, #tpu.memory_space<vmem>>, vector<1x512xf32>
      %46 = math.log %45 : vector<1x512xf32>
      %47 = math.log %43 : vector<1x512xf32>
      %48 = arith.subf %47, %46 : vector<1x512xf32>
      %49 = math.log %44 : vector<1x512xf32>
      %50 = arith.subf %49, %46 : vector<1x512xf32>
      %cst_20 = arith.constant 1.000000e+00 : f32
      %51 = vector.broadcast %cst_20 : f32 to vector<1x512xf32>
      %52 = arith.subf %44, %51 : vector<1x512xf32>
      %53 = arith.mulf %52, %48 : vector<1x512xf32>
      %54 = arith.addf %50, %53 : vector<1x512xf32>
      %55 = arith.mulf %44, %48 : vector<1x512xf32>
      %56 = math.exp %55 : vector<1x512xf32>
      %57 = arith.subf %54, %56 : vector<1x512xf32>
      %58 = arith.addf %42, %57 : vector<1x512xf32>
      %c4_21 = arith.constant 4 : index
      %c512_22 = arith.constant 512 : index
      %59 = vector.load %arg2[%c4_21, %c512_22] : memref<5x4096xf32, #tpu.memory_space<vmem>>, vector<1x512xf32>
      %c2_23 = arith.constant 2 : index
      %c512_24 = arith.constant 512 : index
      %60 = vector.load %arg2[%c2_23, %c512_24] : memref<5x4096xf32, #tpu.memory_space<vmem>>, vector<1x512xf32>
      %61 = math.log %60 : vector<1x512xf32>
      %62 = arith.mulf %59, %61 : vector<1x512xf32>
      %63 = arith.addf %58, %62 : vector<1x512xf32>
      %cst_25 = arith.constant 1.000000e+00 : f32
      %64 = vector.broadcast %cst_25 : f32 to vector<1x512xf32>
      %65 = arith.subf %64, %59 : vector<1x512xf32>
      %cst_26 = arith.constant 1.000000e+00 : f32
      %66 = vector.broadcast %cst_26 : f32 to vector<1x512xf32>
      %67 = arith.subf %66, %60 : vector<1x512xf32>
      %68 = math.log %67 : vector<1x512xf32>
      %69 = arith.mulf %65, %68 : vector<1x512xf32>
      %70 = arith.addf %63, %69 : vector<1x512xf32>
      %71 = arith.addf %41, %70 : vector<1x512xf32>
      %cst_27 = arith.constant 0.000000e+00 : f32
      %72 = vector.broadcast %cst_27 : f32 to vector<1x512xf32>
      %c3_28 = arith.constant 3 : index
      %c1024 = arith.constant 1024 : index
      %73 = vector.load %arg2[%c3_28, %c1024] : memref<5x4096xf32, #tpu.memory_space<vmem>>, vector<1x512xf32>
      %c0_29 = arith.constant 0 : index
      %c1024_30 = arith.constant 1024 : index
      %74 = vector.load %arg2[%c0_29, %c1024_30] : memref<5x4096xf32, #tpu.memory_space<vmem>>, vector<1x512xf32>
      %c1_31 = arith.constant 1 : index
      %c1024_32 = arith.constant 1024 : index
      %75 = vector.load %arg2[%c1_31, %c1024_32] : memref<5x4096xf32, #tpu.memory_space<vmem>>, vector<1x512xf32>
      %76 = math.log %75 : vector<1x512xf32>
      %77 = math.log %73 : vector<1x512xf32>
      %78 = arith.subf %77, %76 : vector<1x512xf32>
      %79 = math.log %74 : vector<1x512xf32>
      %80 = arith.subf %79, %76 : vector<1x512xf32>
      %cst_33 = arith.constant 1.000000e+00 : f32
      %81 = vector.broadcast %cst_33 : f32 to vector<1x512xf32>
      %82 = arith.subf %74, %81 : vector<1x512xf32>
      %83 = arith.mulf %82, %78 : vector<1x512xf32>
      %84 = arith.addf %80, %83 : vector<1x512xf32>
      %85 = arith.mulf %74, %78 : vector<1x512xf32>
      %86 = math.exp %85 : vector<1x512xf32>
      %87 = arith.subf %84, %86 : vector<1x512xf32>
      %88 = arith.addf %72, %87 : vector<1x512xf32>
      %c4_34 = arith.constant 4 : index
      %c1024_35 = arith.constant 1024 : index
      %89 = vector.load %arg2[%c4_34, %c1024_35] : memref<5x4096xf32, #tpu.memory_space<vmem>>, vector<1x512xf32>
      %c2_36 = arith.constant 2 : index
      %c1024_37 = arith.constant 1024 : index
      %90 = vector.load %arg2[%c2_36, %c1024_37] : memref<5x4096xf32, #tpu.memory_space<vmem>>, vector<1x512xf32>
      %91 = math.log %90 : vector<1x512xf32>
      %92 = arith.mulf %89, %91 : vector<1x512xf32>
      %93 = arith.addf %88, %92 : vector<1x512xf32>
      %cst_38 = arith.constant 1.000000e+00 : f32
      %94 = vector.broadcast %cst_38 : f32 to vector<1x512xf32>
      %95 = arith.subf %94, %89 : vector<1x512xf32>
      %cst_39 = arith.constant 1.000000e+00 : f32
      %96 = vector.broadcast %cst_39 : f32 to vector<1x512xf32>
      %97 = arith.subf %96, %90 : vector<1x512xf32>
      %98 = math.log %97 : vector<1x512xf32>
      %99 = arith.mulf %95, %98 : vector<1x512xf32>
      %100 = arith.addf %93, %99 : vector<1x512xf32>
      %101 = arith.addf %71, %100 : vector<1x512xf32>
      %cst_40 = arith.constant 0.000000e+00 : f32
      %102 = vector.broadcast %cst_40 : f32 to vector<1x512xf32>
      %c3_41 = arith.constant 3 : index
      %c1536 = arith.constant 1536 : index
      %103 = vector.load %arg2[%c3_41, %c1536] : memref<5x4096xf32, #tpu.memory_space<vmem>>, vector<1x512xf32>
      %c0_42 = arith.constant 0 : index
      %c1536_43 = arith.constant 1536 : index
      %104 = vector.load %arg2[%c0_42, %c1536_43] : memref<5x4096xf32, #tpu.memory_space<vmem>>, vector<1x512xf32>
      %c1_44 = arith.constant 1 : index
      %c1536_45 = arith.constant 1536 : index
      %105 = vector.load %arg2[%c1_44, %c1536_45] : memref<5x4096xf32, #tpu.memory_space<vmem>>, vector<1x512xf32>
      %106 = math.log %105 : vector<1x512xf32>
      %107 = math.log %103 : vector<1x512xf32>
      %108 = arith.subf %107, %106 : vector<1x512xf32>
      %109 = math.log %104 : vector<1x512xf32>
      %110 = arith.subf %109, %106 : vector<1x512xf32>
      %cst_46 = arith.constant 1.000000e+00 : f32
      %111 = vector.broadcast %cst_46 : f32 to vector<1x512xf32>
      %112 = arith.subf %104, %111 : vector<1x512xf32>
      %113 = arith.mulf %112, %108 : vector<1x512xf32>
      %114 = arith.addf %110, %113 : vector<1x512xf32>
      %115 = arith.mulf %104, %108 : vector<1x512xf32>
      %116 = math.exp %115 : vector<1x512xf32>
      %117 = arith.subf %114, %116 : vector<1x512xf32>
      %118 = arith.addf %102, %117 : vector<1x512xf32>
      %c4_47 = arith.constant 4 : index
      %c1536_48 = arith.constant 1536 : index
      %119 = vector.load %arg2[%c4_47, %c1536_48] : memref<5x4096xf32, #tpu.memory_space<vmem>>, vector<1x512xf32>
      %c2_49 = arith.constant 2 : index
      %c1536_50 = arith.constant 1536 : index
      %120 = vector.load %arg2[%c2_49, %c1536_50] : memref<5x4096xf32, #tpu.memory_space<vmem>>, vector<1x512xf32>
      %121 = math.log %120 : vector<1x512xf32>
      %122 = arith.mulf %119, %121 : vector<1x512xf32>
      %123 = arith.addf %118, %122 : vector<1x512xf32>
      %cst_51 = arith.constant 1.000000e+00 : f32
      %124 = vector.broadcast %cst_51 : f32 to vector<1x512xf32>
      %125 = arith.subf %124, %119 : vector<1x512xf32>
      %cst_52 = arith.constant 1.000000e+00 : f32
      %126 = vector.broadcast %cst_52 : f32 to vector<1x512xf32>
      %127 = arith.subf %126, %120 : vector<1x512xf32>
      %128 = math.log %127 : vector<1x512xf32>
      %129 = arith.mulf %125, %128 : vector<1x512xf32>
      %130 = arith.addf %123, %129 : vector<1x512xf32>
      %131 = arith.addf %101, %130 : vector<1x512xf32>
      %cst_53 = arith.constant 0.000000e+00 : f32
      %132 = vector.broadcast %cst_53 : f32 to vector<1x512xf32>
      %c3_54 = arith.constant 3 : index
      %c2048 = arith.constant 2048 : index
      %133 = vector.load %arg2[%c3_54, %c2048] : memref<5x4096xf32, #tpu.memory_space<vmem>>, vector<1x512xf32>
      %c0_55 = arith.constant 0 : index
      %c2048_56 = arith.constant 2048 : index
      %134 = vector.load %arg2[%c0_55, %c2048_56] : memref<5x4096xf32, #tpu.memory_space<vmem>>, vector<1x512xf32>
      %c1_57 = arith.constant 1 : index
      %c2048_58 = arith.constant 2048 : index
      %135 = vector.load %arg2[%c1_57, %c2048_58] : memref<5x4096xf32, #tpu.memory_space<vmem>>, vector<1x512xf32>
      %136 = math.log %135 : vector<1x512xf32>
      %137 = math.log %133 : vector<1x512xf32>
      %138 = arith.subf %137, %136 : vector<1x512xf32>
      %139 = math.log %134 : vector<1x512xf32>
      %140 = arith.subf %139, %136 : vector<1x512xf32>
      %cst_59 = arith.constant 1.000000e+00 : f32
      %141 = vector.broadcast %cst_59 : f32 to vector<1x512xf32>
      %142 = arith.subf %134, %141 : vector<1x512xf32>
      %143 = arith.mulf %142, %138 : vector<1x512xf32>
      %144 = arith.addf %140, %143 : vector<1x512xf32>
      %145 = arith.mulf %134, %138 : vector<1x512xf32>
      %146 = math.exp %145 : vector<1x512xf32>
      %147 = arith.subf %144, %146 : vector<1x512xf32>
      %148 = arith.addf %132, %147 : vector<1x512xf32>
      %c4_60 = arith.constant 4 : index
      %c2048_61 = arith.constant 2048 : index
      %149 = vector.load %arg2[%c4_60, %c2048_61] : memref<5x4096xf32, #tpu.memory_space<vmem>>, vector<1x512xf32>
      %c2_62 = arith.constant 2 : index
      %c2048_63 = arith.constant 2048 : index
      %150 = vector.load %arg2[%c2_62, %c2048_63] : memref<5x4096xf32, #tpu.memory_space<vmem>>, vector<1x512xf32>
      %151 = math.log %150 : vector<1x512xf32>
      %152 = arith.mulf %149, %151 : vector<1x512xf32>
      %153 = arith.addf %148, %152 : vector<1x512xf32>
      %cst_64 = arith.constant 1.000000e+00 : f32
      %154 = vector.broadcast %cst_64 : f32 to vector<1x512xf32>
      %155 = arith.subf %154, %149 : vector<1x512xf32>
      %cst_65 = arith.constant 1.000000e+00 : f32
      %156 = vector.broadcast %cst_65 : f32 to vector<1x512xf32>
      %157 = arith.subf %156, %150 : vector<1x512xf32>
      %158 = math.log %157 : vector<1x512xf32>
      %159 = arith.mulf %155, %158 : vector<1x512xf32>
      %160 = arith.addf %153, %159 : vector<1x512xf32>
      %161 = arith.addf %131, %160 : vector<1x512xf32>
      %cst_66 = arith.constant 0.000000e+00 : f32
      %162 = vector.broadcast %cst_66 : f32 to vector<1x512xf32>
      %c3_67 = arith.constant 3 : index
      %c2560 = arith.constant 2560 : index
      %163 = vector.load %arg2[%c3_67, %c2560] : memref<5x4096xf32, #tpu.memory_space<vmem>>, vector<1x512xf32>
      %c0_68 = arith.constant 0 : index
      %c2560_69 = arith.constant 2560 : index
      %164 = vector.load %arg2[%c0_68, %c2560_69] : memref<5x4096xf32, #tpu.memory_space<vmem>>, vector<1x512xf32>
      %c1_70 = arith.constant 1 : index
      %c2560_71 = arith.constant 2560 : index
      %165 = vector.load %arg2[%c1_70, %c2560_71] : memref<5x4096xf32, #tpu.memory_space<vmem>>, vector<1x512xf32>
      %166 = math.log %165 : vector<1x512xf32>
      %167 = math.log %163 : vector<1x512xf32>
      %168 = arith.subf %167, %166 : vector<1x512xf32>
      %169 = math.log %164 : vector<1x512xf32>
      %170 = arith.subf %169, %166 : vector<1x512xf32>
      %cst_72 = arith.constant 1.000000e+00 : f32
      %171 = vector.broadcast %cst_72 : f32 to vector<1x512xf32>
      %172 = arith.subf %164, %171 : vector<1x512xf32>
      %173 = arith.mulf %172, %168 : vector<1x512xf32>
      %174 = arith.addf %170, %173 : vector<1x512xf32>
      %175 = arith.mulf %164, %168 : vector<1x512xf32>
      %176 = math.exp %175 : vector<1x512xf32>
      %177 = arith.subf %174, %176 : vector<1x512xf32>
      %178 = arith.addf %162, %177 : vector<1x512xf32>
      %c4_73 = arith.constant 4 : index
      %c2560_74 = arith.constant 2560 : index
      %179 = vector.load %arg2[%c4_73, %c2560_74] : memref<5x4096xf32, #tpu.memory_space<vmem>>, vector<1x512xf32>
      %c2_75 = arith.constant 2 : index
      %c2560_76 = arith.constant 2560 : index
      %180 = vector.load %arg2[%c2_75, %c2560_76] : memref<5x4096xf32, #tpu.memory_space<vmem>>, vector<1x512xf32>
      %181 = math.log %180 : vector<1x512xf32>
      %182 = arith.mulf %179, %181 : vector<1x512xf32>
      %183 = arith.addf %178, %182 : vector<1x512xf32>
      %cst_77 = arith.constant 1.000000e+00 : f32
      %184 = vector.broadcast %cst_77 : f32 to vector<1x512xf32>
      %185 = arith.subf %184, %179 : vector<1x512xf32>
      %cst_78 = arith.constant 1.000000e+00 : f32
      %186 = vector.broadcast %cst_78 : f32 to vector<1x512xf32>
      %187 = arith.subf %186, %180 : vector<1x512xf32>
      %188 = math.log %187 : vector<1x512xf32>
      %189 = arith.mulf %185, %188 : vector<1x512xf32>
      %190 = arith.addf %183, %189 : vector<1x512xf32>
      %191 = arith.addf %161, %190 : vector<1x512xf32>
      %cst_79 = arith.constant 0.000000e+00 : f32
      %192 = vector.broadcast %cst_79 : f32 to vector<1x512xf32>
      %c3_80 = arith.constant 3 : index
      %c3072 = arith.constant 3072 : index
      %193 = vector.load %arg2[%c3_80, %c3072] : memref<5x4096xf32, #tpu.memory_space<vmem>>, vector<1x512xf32>
      %c0_81 = arith.constant 0 : index
      %c3072_82 = arith.constant 3072 : index
      %194 = vector.load %arg2[%c0_81, %c3072_82] : memref<5x4096xf32, #tpu.memory_space<vmem>>, vector<1x512xf32>
      %c1_83 = arith.constant 1 : index
      %c3072_84 = arith.constant 3072 : index
      %195 = vector.load %arg2[%c1_83, %c3072_84] : memref<5x4096xf32, #tpu.memory_space<vmem>>, vector<1x512xf32>
      %196 = math.log %195 : vector<1x512xf32>
      %197 = math.log %193 : vector<1x512xf32>
      %198 = arith.subf %197, %196 : vector<1x512xf32>
      %199 = math.log %194 : vector<1x512xf32>
      %200 = arith.subf %199, %196 : vector<1x512xf32>
      %cst_85 = arith.constant 1.000000e+00 : f32
      %201 = vector.broadcast %cst_85 : f32 to vector<1x512xf32>
      %202 = arith.subf %194, %201 : vector<1x512xf32>
      %203 = arith.mulf %202, %198 : vector<1x512xf32>
      %204 = arith.addf %200, %203 : vector<1x512xf32>
      %205 = arith.mulf %194, %198 : vector<1x512xf32>
      %206 = math.exp %205 : vector<1x512xf32>
      %207 = arith.subf %204, %206 : vector<1x512xf32>
      %208 = arith.addf %192, %207 : vector<1x512xf32>
      %c4_86 = arith.constant 4 : index
      %c3072_87 = arith.constant 3072 : index
      %209 = vector.load %arg2[%c4_86, %c3072_87] : memref<5x4096xf32, #tpu.memory_space<vmem>>, vector<1x512xf32>
      %c2_88 = arith.constant 2 : index
      %c3072_89 = arith.constant 3072 : index
      %210 = vector.load %arg2[%c2_88, %c3072_89] : memref<5x4096xf32, #tpu.memory_space<vmem>>, vector<1x512xf32>
      %211 = math.log %210 : vector<1x512xf32>
      %212 = arith.mulf %209, %211 : vector<1x512xf32>
      %213 = arith.addf %208, %212 : vector<1x512xf32>
      %cst_90 = arith.constant 1.000000e+00 : f32
      %214 = vector.broadcast %cst_90 : f32 to vector<1x512xf32>
      %215 = arith.subf %214, %209 : vector<1x512xf32>
      %cst_91 = arith.constant 1.000000e+00 : f32
      %216 = vector.broadcast %cst_91 : f32 to vector<1x512xf32>
      %217 = arith.subf %216, %210 : vector<1x512xf32>
      %218 = math.log %217 : vector<1x512xf32>
      %219 = arith.mulf %215, %218 : vector<1x512xf32>
      %220 = arith.addf %213, %219 : vector<1x512xf32>
      %221 = arith.addf %191, %220 : vector<1x512xf32>
      %cst_92 = arith.constant 0.000000e+00 : f32
      %222 = vector.broadcast %cst_92 : f32 to vector<1x512xf32>
      %c3_93 = arith.constant 3 : index
      %c3584 = arith.constant 3584 : index
      %223 = vector.load %arg2[%c3_93, %c3584] : memref<5x4096xf32, #tpu.memory_space<vmem>>, vector<1x512xf32>
      %c0_94 = arith.constant 0 : index
      %c3584_95 = arith.constant 3584 : index
      %224 = vector.load %arg2[%c0_94, %c3584_95] : memref<5x4096xf32, #tpu.memory_space<vmem>>, vector<1x512xf32>
      %c1_96 = arith.constant 1 : index
      %c3584_97 = arith.constant 3584 : index
      %225 = vector.load %arg2[%c1_96, %c3584_97] : memref<5x4096xf32, #tpu.memory_space<vmem>>, vector<1x512xf32>
      %226 = math.log %225 : vector<1x512xf32>
      %227 = math.log %223 : vector<1x512xf32>
      %228 = arith.subf %227, %226 : vector<1x512xf32>
      %229 = math.log %224 : vector<1x512xf32>
      %230 = arith.subf %229, %226 : vector<1x512xf32>
      %cst_98 = arith.constant 1.000000e+00 : f32
      %231 = vector.broadcast %cst_98 : f32 to vector<1x512xf32>
      %232 = arith.subf %224, %231 : vector<1x512xf32>
      %233 = arith.mulf %232, %228 : vector<1x512xf32>
      %234 = arith.addf %230, %233 : vector<1x512xf32>
      %235 = arith.mulf %224, %228 : vector<1x512xf32>
      %236 = math.exp %235 : vector<1x512xf32>
      %237 = arith.subf %234, %236 : vector<1x512xf32>
      %238 = arith.addf %222, %237 : vector<1x512xf32>
      %c4_99 = arith.constant 4 : index
      %c3584_100 = arith.constant 3584 : index
      %239 = vector.load %arg2[%c4_99, %c3584_100] : memref<5x4096xf32, #tpu.memory_space<vmem>>, vector<1x512xf32>
      %c2_101 = arith.constant 2 : index
      %c3584_102 = arith.constant 3584 : index
      %240 = vector.load %arg2[%c2_101, %c3584_102] : memref<5x4096xf32, #tpu.memory_space<vmem>>, vector<1x512xf32>
      %241 = math.log %240 : vector<1x512xf32>
      %242 = arith.mulf %239, %241 : vector<1x512xf32>
      %243 = arith.addf %238, %242 : vector<1x512xf32>
      %cst_103 = arith.constant 1.000000e+00 : f32
      %244 = vector.broadcast %cst_103 : f32 to vector<1x512xf32>
      %245 = arith.subf %244, %239 : vector<1x512xf32>
      %cst_104 = arith.constant 1.000000e+00 : f32
      %246 = vector.broadcast %cst_104 : f32 to vector<1x512xf32>
      %247 = arith.subf %246, %240 : vector<1x512xf32>
      %248 = math.log %247 : vector<1x512xf32>
      %249 = arith.mulf %245, %248 : vector<1x512xf32>
      %250 = arith.addf %243, %249 : vector<1x512xf32>
      %251 = arith.addf %221, %250 : vector<1x512xf32>
      %c0_105 = arith.constant 0 : index
      %c0_106 = arith.constant 0 : index
      %252 = vector.load %arg3[%c0_105, %c0_106] : memref<8x512xf32, #tpu.memory_space<vmem>>, vector<1x512xf32>
      %253 = arith.addf %252, %251 : vector<1x512xf32>
      %c0_107 = arith.constant 0 : index
      %c0_108 = arith.constant 0 : index
      %254 = vector.load %arg3[%c0_107, %c0_108] : memref<8x512xf32, #tpu.memory_space<vmem>>, vector<1x512xf32>
      tpu.vector_store %arg3[%c0_107, %c0_108], %253 {strides = array<i32>} : memref<8x512xf32, #tpu.memory_space<vmem>>, vector<1x512xf32>,
    } else {
    }
    %c0_i32_3 = arith.constant 0 : i32
    %8 = arith.cmpi eq, %1, %c0_i32_3 : i32
    %9 = arith.extui %8 : i1 to i32
    %c0_i32_4 = arith.constant 0 : i32
    %10 = arith.cmpi ne, %9, %c0_i32_4 : i32
    scf.if %10 {
      %cst = arith.constant 0.000000e+00 : f32
      %11 = vector.broadcast %cst : f32 to vector<1x512xf32>
      %cst_5 = arith.constant 0.000000e+00 : f32
      %12 = vector.broadcast %cst_5 : f32 to vector<1x512xf32>
      %c3 = arith.constant 3 : index
      %c0 = arith.constant 0 : index
      %13 = vector.load %arg2[%c3, %c0] : memref<5x4096xf32, #tpu.memory_space<vmem>>, vector<1x512xf32>
      %c0_6 = arith.constant 0 : index
      %c0_7 = arith.constant 0 : index
      %14 = vector.load %arg2[%c0_6, %c0_7] : memref<5x4096xf32, #tpu.memory_space<vmem>>, vector<1x512xf32>
      %c1 = arith.constant 1 : index
      %c0_8 = arith.constant 0 : index
      %15 = vector.load %arg2[%c1, %c0_8] : memref<5x4096xf32, #tpu.memory_space<vmem>>, vector<1x512xf32>
      %16 = math.log %15 : vector<1x512xf32>
      %17 = math.log %13 : vector<1x512xf32>
      %18 = arith.subf %17, %16 : vector<1x512xf32>
      %19 = math.log %14 : vector<1x512xf32>
      %20 = arith.subf %19, %16 : vector<1x512xf32>
      %cst_9 = arith.constant 1.000000e+00 : f32
      %21 = vector.broadcast %cst_9 : f32 to vector<1x512xf32>
      %22 = arith.subf %14, %21 : vector<1x512xf32>
      %23 = arith.mulf %22, %18 : vector<1x512xf32>
      %24 = arith.addf %20, %23 : vector<1x512xf32>
      %25 = arith.mulf %14, %18 : vector<1x512xf32>
      %26 = math.exp %25 : vector<1x512xf32>
      %27 = arith.subf %24, %26 : vector<1x512xf32>
      %28 = arith.addf %12, %27 : vector<1x512xf32>
      %c4 = arith.constant 4 : index
      %c0_10 = arith.constant 0 : index
      %29 = vector.load %arg2[%c4, %c0_10] : memref<5x4096xf32, #tpu.memory_space<vmem>>, vector<1x512xf32>
      %c2 = arith.constant 2 : index
      %c0_11 = arith.constant 0 : index
      %30 = vector.load %arg2[%c2, %c0_11] : memref<5x4096xf32, #tpu.memory_space<vmem>>, vector<1x512xf32>
      %31 = math.log %30 : vector<1x512xf32>
      %32 = arith.mulf %29, %31 : vector<1x512xf32>
      %33 = arith.addf %28, %32 : vector<1x512xf32>
      %cst_12 = arith.constant 1.000000e+00 : f32
      %34 = vector.broadcast %cst_12 : f32 to vector<1x512xf32>
      %35 = arith.subf %34, %29 : vector<1x512xf32>
      %cst_13 = arith.constant 1.000000e+00 : f32
      %36 = vector.broadcast %cst_13 : f32 to vector<1x512xf32>
      %37 = arith.subf %36, %30 : vector<1x512xf32>
      %38 = math.log %37 : vector<1x512xf32>
      %39 = arith.mulf %35, %38 : vector<1x512xf32>
      %40 = arith.addf %33, %39 : vector<1x512xf32>
      %41 = tpu.iota {dimensions = array<i32: 1>} : vector<1x512xi32>
      %c0_i32_14 = arith.constant 0 : i32
      %42 = vector.broadcast %c0_i32_14 : i32 to vector<1x512xi32>
      %43 = arith.addi %42, %41 : vector<1x512xi32>
      %c200_i32 = arith.constant 200 : i32
      %44 = vector.broadcast %c200_i32 : i32 to vector<1x512xi32>
      %45 = arith.cmpi slt, %43, %44 : vector<1x512xi32>
      %cst_15 = arith.constant 0.000000e+00 : f32
      %46 = vector.broadcast %cst_15 : f32 to vector<1x512xf32>
      %47 = arith.select %45, %40, %46 : vector<1x512xi1>, vector<1x512xf32>
      %48 = arith.addf %11, %47 : vector<1x512xf32>
      %c0_16 = arith.constant 0 : index
      %c0_17 = arith.constant 0 : index
      %49 = vector.load %arg3[%c0_16, %c0_17] : memref<8x512xf32, #tpu.memory_space<vmem>>, vector<1x512xf32>
      %50 = arith.addf %49, %48 : vector<1x512xf32>
      %c0_18 = arith.constant 0 : index
      %c0_19 = arith.constant 0 : index
      %51 = vector.load %arg3[%c0_18, %c0_19] : memref<8x512xf32, #tpu.memory_space<vmem>>, vector<1x512xf32>
      tpu.vector_store %arg3[%c0_18, %c0_19], %50 {strides = array<i32>} : memref<8x512xf32, #tpu.memory_space<vmem>>, vector<1x512xf32>,
    } else {
    }
    return
  }
  func.func @transform_0(%arg0: i32, %arg1: i32) -> (i32, i32) {
    %c1_i32 = arith.constant 1 : i32
    %0 = arith.muli %arg0, %c1_i32 : i32
    %1 = arith.addi %0, %arg1 : i32
    %c0_i32 = arith.constant 0 : i32
    %2 = arith.minsi %1, %c0_i32 : i32
    %c0_i32_0 = arith.constant 0 : i32
    %c0_i32_1 = arith.constant 0 : i32
    return %c0_i32_0, %2 : i32, i32
  }
  func.func @transform_1(%arg0: i32, %arg1: i32) -> (i32, i32) {
    %c0_i32 = arith.constant 0 : i32
    %c0_i32_0 = arith.constant 0 : i32
    return %arg0, %c0_i32 : i32, i32
  }
}

</mosaic_0001>

<llo_original>
// kernel: tpu_custom_call.1
$region0: #{tpu_custom_call.1}
  #allocation0 [shape = 'u32[]', space=smem, size = 0x4, offset = 0x4, fixed_abs, tag = 'smem constant byte address 0x4 - core index']
  #allocation1 [shape = 'u32[144,128]{1,0:T(1,128)}', space=vmem, size = 0x12000, scoped, tag = 'internal scratch']
  %s0 = inlined_call_operand.hbm [shape: f32[5,200], index: 0, kind: input, shape index: {}]
  %s1 = inlined_call_operand.hbm [shape: f32[8,512], index: 1, kind: output, shape index: {}]
  %s2 = sld [smem:[#allocation0]]
  $region30: #{tpu_custom_call.1} parent=0
    _
  %s4 = ssub.s32 1, %s2
  %s5 = scalar_select 0, %s4, %s2
  $region1: #{tpu_custom_call.1} parent=0
    #allocation2 [shape = 'u8[131072]{0}', space=vmem, size = 0x20000, scoped, tag = 'input window, operand 0, single buffered']
    #allocation3 [shape = 's32[1]{0}', space=sflag, size = 0x4, scoped, tag = 'scoped memory for tpu_custom_call.1']
    #allocation4 [shape = 's32[1]{0}', space=sflag, size = 0x4, scoped, tag = 'scoped memory for tpu_custom_call.1']
    #allocation5 [shape = 'u8[16384]{0}', space=vmem, size = 0x4000, scoped, tag = 'output window, operand 0, single buffered']
    %6 = vsyncpa [#allocation3], 0
    %7 = vsyncpa [#allocation4], 0
    // Predicated region
    $region2: #{tpu_custom_call.1} parent=1 // pred_check
      _
    $region3: #{tpu_custom_call.1} parent=1 // pred_check_branch
      %9 = sbr.rel (0) target = $region5
    $region4: #{tpu_custom_call.1} parent=1 // pred_region
      %s10 = sadd.s32 0, 0
      %p11 = scmp.lt.s32.totalorder %s10, 0
      %s12 = scalar_select %p11, %s10, 0
      %s13 = smul.u32 32, %s12
      %s14 = ssub.s32 2, %s13
      %s15 = smul.u32 128, %s14
      %s17 = ssub.s32 4096, %s15
      %18 = vsyncadd [#allocation3], %s17
      %p19 = scmp.ne.s32.totalorder 0, %s15
      %s20 = smul.addr %s13, 128
      %s21 = scalar_lea.hbm %s0, %s20
      %s22 = smul.u32 %s14, 8
      %s23 = sshll.u32 %s22, 4
      %s24 = sshll.u32 [#allocation2], 4
      %s25 = int_to_ptr.vmem [resolvable:$true] %s24
      %27 = dma.hbm_to_vmem [thread:$0]  (%p19), %s21, %s23, %s25, [#allocation3]
    $region5: #{tpu_custom_call.1} parent=1 // pred_fallthru
      _
    // Predicated region
    $region6: #{tpu_custom_call.1} parent=1 // pred_check
      _
    $region7: #{tpu_custom_call.1} parent=1 // pred_check_branch
      %29 = sbr.rel (0) target = $region9
    $region8: #{tpu_custom_call.1} parent=1 // pred_region
      %30 = dma.done [#allocation3], 4096
    $region9: #{tpu_custom_call.1} parent=1 // pred_fallthru
      _
    %s31 = sadd.s32 0, 0
    %p32 = scmp.lt.s32.totalorder %s31, 0
    %s33 = scalar_select %p32, %s31, 0
    %s34 = smul.u32 32, %s33
    %s35 = ssub.s32 2, %s34
    %s36 = smul.u32 128, %s35
    %s37 = sadd.s32 0, 0
    %p38 = scmp.eq.s32.totalorder 0, 0
    // Predicated region
    $region10: #{tpu_custom_call.1} parent=1 // pred_check
      %p39 = pneg %p38
    $region11: #{tpu_custom_call.1} parent=1 // pred_check_branch
      %41 = sbr.rel (%p39) target = $region13
    $region12: #{tpu_custom_call.1} parent=1 // pred_region
      %42 = vst [vmem:[#allocation5] sm:$0xff] 0.0
      %43 = vst [vmem:[#allocation5 + $0x8] sm:$0xff] 0.0
      %44 = vst [vmem:[#allocation5 + $0x10] sm:$0xff] 0.0
      %45 = vst [vmem:[#allocation5 + $0x18] sm:$0xff] 0.0
    $region13: #{tpu_custom_call.1} parent=1 // pred_fallthru
      _
    %p46 = scmp.lt.s32.totalorder %s37, 0
    // Predicated region
    $region14: #{tpu_custom_call.1} parent=1 // pred_check
      %p47 = pneg %p46
    $region15: #{tpu_custom_call.1} parent=1 // pred_check_branch
      %49 = sbr.rel (%p47) target = $region17
    $region16: #{tpu_custom_call.1} parent=1 // pred_region
      %s50 = scalar_lea.vmem [#allocation2], 3
      %v51 = vld [vmem:[%s50] ss:$8 sm:$0xf]
      %v52 = vld [vmem:[#allocation2] ss:$8 sm:$0xf]
      %s53 = scalar_lea.vmem [#allocation2], 1
      %v54 = vld [vmem:[%s53] ss:$8 sm:$0xf]
      %v55 = vlog2.pop %v54
      %v56 = vmul.f32 %v55, 0.6931472
      %v57 = vlog2.pop %v51
      %v58 = vmul.f32 %v57, 0.6931472
      %v59 = vsub.f32 %v58, %v56
      %v60 = vlog2.pop %v52
      %v61 = vmul.f32 %v60, 0.6931472
      %v62 = vsub.f32 %v61, %v56
      %v63 = vsub.f32 %v52, 1.0
      %v64 = vmul.f32 %v63, %v59
      %v65 = vadd.f32 %v62, %v64
      %v66 = vmul.f32 %v52, %v59
      %v67 = vmul.f32 %v66, 1.442695
      %v68 = vpow.pop %v67
      %v69 = vsub.f32 %v65, %v68
      %v70 = vadd.f32 %v69, 0.0
      %s71 = scalar_lea.vmem [#allocation2], 4
      %v72 = vld [vmem:[%s71] ss:$8 sm:$0xf]
      %s73 = scalar_lea.vmem [#allocation2], 2
      %v74 = vld [vmem:[%s73] ss:$8 sm:$0xf]
      %v75 = vlog2.pop %v74
      %v76 = vmul.f32 %v75, 0.6931472
      %v77 = vmul.f32 %v72, %v76
      %v78 = vadd.f32 %v70, %v77
      %v79 = vsub.f32 1.0, %v72
      %v80 = vsub.f32 1.0, %v74
      %v81 = vlog2.pop %v80
      %v82 = vmul.f32 %v81, 0.6931472
      %v83 = vmul.f32 %v79, %v82
      %v84 = vadd.f32 %v78, %v83
      %v85 = vadd.f32 %v84, 0.0
      %s86 = scalar_lea.vmem [#allocation2], 35
      %v87 = vld [vmem:[%s86] ss:$8 sm:$0xf]
      %s88 = scalar_lea.vmem [#allocation2], 32
      %v89 = vld [vmem:[%s88] ss:$8 sm:$0xf]
      %s90 = scalar_lea.vmem [#allocation2], 33
      %v91 = vld [vmem:[%s90] ss:$8 sm:$0xf]
      %v92 = vlog2.pop %v91
      %v93 = vmul.f32 %v92, 0.6931472
      %v94 = vlog2.pop %v87
      %v95 = vmul.f32 %v94, 0.6931472
      %v96 = vsub.f32 %v95, %v93
      %v97 = vlog2.pop %v89
      %v98 = vmul.f32 %v97, 0.6931472
      %v99 = vsub.f32 %v98, %v93
      %v100 = vsub.f32 %v89, 1.0
      %v101 = vmul.f32 %v100, %v96
      %v102 = vadd.f32 %v99, %v101
      %v103 = vmul.f32 %v89, %v96
      %v104 = vmul.f32 %v103, 1.442695
      %v105 = vpow.pop %v104
      %v106 = vsub.f32 %v102, %v105
      %v107 = vadd.f32 %v106, 0.0
      %s108 = scalar_lea.vmem [#allocation2], 36
      %v109 = vld [vmem:[%s108] ss:$8 sm:$0xf]
      %s110 = scalar_lea.vmem [#allocation2], 34
      %v111 = vld [vmem:[%s110] ss:$8 sm:$0xf]
      %v112 = vlog2.pop %v111
      %v113 = vmul.f32 %v112, 0.6931472
      %v114 = vmul.f32 %v109, %v113
      %v115 = vadd.f32 %v107, %v114
      %v116 = vsub.f32 1.0, %v109
      %v117 = vsub.f32 1.0, %v111
      %v118 = vlog2.pop %v117
      %v119 = vmul.f32 %v118, 0.6931472
      %v120 = vmul.f32 %v116, %v119
      %v121 = vadd.f32 %v115, %v120
      %v122 = vadd.f32 %v85, %v121
      %s123 = scalar_lea.vmem [#allocation2], 67
      %v124 = vld [vmem:[%s123] ss:$8 sm:$0xf]
      %s125 = scalar_lea.vmem [#allocation2], 64
      %v126 = vld [vmem:[%s125] ss:$8 sm:$0xf]
      %s127 = scalar_lea.vmem [#allocation2], 65
      %v128 = vld [vmem:[%s127] ss:$8 sm:$0xf]
      %v129 = vlog2.pop %v128
      %v130 = vmul.f32 %v129, 0.6931472
      %v131 = vlog2.pop %v124
      %v132 = vmul.f32 %v131, 0.6931472
      %v133 = vsub.f32 %v132, %v130
      %v134 = vlog2.pop %v126
      %v135 = vmul.f32 %v134, 0.6931472
      %v136 = vsub.f32 %v135, %v130
      %v137 = vsub.f32 %v126, 1.0
      %v138 = vmul.f32 %v137, %v133
      %v139 = vadd.f32 %v136, %v138
      %v140 = vmul.f32 %v126, %v133
      %v141 = vmul.f32 %v140, 1.442695
      %v142 = vpow.pop %v141
      %v143 = vsub.f32 %v139, %v142
      %v144 = vadd.f32 %v143, 0.0
      %s145 = scalar_lea.vmem [#allocation2], 68
      %v146 = vld [vmem:[%s145] ss:$8 sm:$0xf]
      %s147 = scalar_lea.vmem [#allocation2], 66
      %v148 = vld [vmem:[%s147] ss:$8 sm:$0xf]
      %v149 = vlog2.pop %v148
      %v150 = vmul.f32 %v149, 0.6931472
      %v151 = vmul.f32 %v146, %v150
      %v152 = vadd.f32 %v144, %v151
      %v153 = vsub.f32 1.0, %v146
      %v154 = vsub.f32 1.0, %v148
      %v155 = vlog2.pop %v154
      %v156 = vmul.f32 %v155, 0.6931472
      %v157 = vmul.f32 %v153, %v156
      %v158 = vadd.f32 %v152, %v157
      %v159 = vadd.f32 %v122, %v158
      %s160 = scalar_lea.vmem [#allocation2], 99
      %v161 = vld [vmem:[%s160] ss:$8 sm:$0xf]
      %s162 = scalar_lea.vmem [#allocation2], 96
      %v163 = vld [vmem:[%s162] ss:$8 sm:$0xf]
      %s164 = scalar_lea.vmem [#allocation2], 97
      %v165 = vld [vmem:[%s164] ss:$8 sm:$0xf]
      %v166 = vlog2.pop %v165
      %v167 = vmul.f32 %v166, 0.6931472
      %v168 = vlog2.pop %v161
      %v169 = vmul.f32 %v168, 0.6931472
      %v170 = vsub.f32 %v169, %v167
      %v171 = vlog2.pop %v163
      %v172 = vmul.f32 %v171, 0.6931472
      %v173 = vsub.f32 %v172, %v167
      %v174 = vsub.f32 %v163, 1.0
      %v175 = vmul.f32 %v174, %v170
      %v176 = vadd.f32 %v173, %v175
      %v177 = vmul.f32 %v163, %v170
      %v178 = vmul.f32 %v177, 1.442695
      %v179 = vpow.pop %v178
      %v180 = vsub.f32 %v176, %v179
      %v181 = vadd.f32 %v180, 0.0
      %s182 = scalar_lea.vmem [#allocation2], 100
      %v183 = vld [vmem:[%s182] ss:$8 sm:$0xf]
      %s184 = scalar_lea.vmem [#allocation2], 98
      %v185 = vld [vmem:[%s184] ss:$8 sm:$0xf]
      %v186 = vlog2.pop %v185
      %v187 = vmul.f32 %v186, 0.6931472
      %v188 = vmul.f32 %v183, %v187
      %v189 = vadd.f32 %v181, %v188
      %v190 = vsub.f32 1.0, %v183
      %v191 = vsub.f32 1.0, %v185
      %v192 = vlog2.pop %v191
      %v193 = vmul.f32 %v192, 0.6931472
      %v194 = vmul.f32 %v190, %v193
      %v195 = vadd.f32 %v189, %v194
      %v196 = vadd.f32 %v159, %v195
      %s197 = scalar_lea.vmem [#allocation2], 131
      %v198 = vld [vmem:[%s197] ss:$8 sm:$0xf]
      %s199 = scalar_lea.vmem [#allocation2], 128
      %v200 = vld [vmem:[%s199] ss:$8 sm:$0xf]
      %s201 = scalar_lea.vmem [#allocation2], 129
      %v202 = vld [vmem:[%s201] ss:$8 sm:$0xf]
      %v203 = vlog2.pop %v202
      %v204 = vmul.f32 %v203, 0.6931472
      %v205 = vlog2.pop %v198
      %v206 = vmul.f32 %v205, 0.6931472
      %v207 = vsub.f32 %v206, %v204
      %v208 = vlog2.pop %v200
      %v209 = vmul.f32 %v208, 0.6931472
      %v210 = vsub.f32 %v209, %v204
      %v211 = vsub.f32 %v200, 1.0
      %v212 = vmul.f32 %v211, %v207
      %v213 = vadd.f32 %v210, %v212
      %v214 = vmul.f32 %v200, %v207
      %v215 = vmul.f32 %v214, 1.442695
      %v216 = vpow.pop %v215
      %v217 = vsub.f32 %v213, %v216
      %v218 = vadd.f32 %v217, 0.0
      %s219 = scalar_lea.vmem [#allocation2], 132
      %v220 = vld [vmem:[%s219] ss:$8 sm:$0xf]
      %s221 = scalar_lea.vmem [#allocation2], 130
      %v222 = vld [vmem:[%s221] ss:$8 sm:$0xf]
      %v223 = vlog2.pop %v222
      %v224 = vmul.f32 %v223, 0.6931472
      %v225 = vmul.f32 %v220, %v224
      %v226 = vadd.f32 %v218, %v225
      %v227 = vsub.f32 1.0, %v220
      %v228 = vsub.f32 1.0, %v222
      %v229 = vlog2.pop %v228
      %v230 = vmul.f32 %v229, 0.6931472
      %v231 = vmul.f32 %v227, %v230
      %v232 = vadd.f32 %v226, %v231
      %v233 = vadd.f32 %v196, %v232
      %s234 = scalar_lea.vmem [#allocation2], 163
      %v235 = vld [vmem:[%s234] ss:$8 sm:$0xf]
      %s236 = scalar_lea.vmem [#allocation2], 160
      %v237 = vld [vmem:[%s236] ss:$8 sm:$0xf]
      %s238 = scalar_lea.vmem [#allocation2], 161
      %v239 = vld [vmem:[%s238] ss:$8 sm:$0xf]
      %v240 = vlog2.pop %v239
      %v241 = vmul.f32 %v240, 0.6931472
      %v242 = vlog2.pop %v235
      %v243 = vmul.f32 %v242, 0.6931472
      %v244 = vsub.f32 %v243, %v241
      %v245 = vlog2.pop %v237
      %v246 = vmul.f32 %v245, 0.6931472
      %v247 = vsub.f32 %v246, %v241
      %v248 = vsub.f32 %v237, 1.0
      %v249 = vmul.f32 %v248, %v244
      %v250 = vadd.f32 %v247, %v249
      %v251 = vmul.f32 %v237, %v244
      %v252 = vmul.f32 %v251, 1.442695
      %v253 = vpow.pop %v252
      %v254 = vsub.f32 %v250, %v253
      %v255 = vadd.f32 %v254, 0.0
      %s256 = scalar_lea.vmem [#allocation2], 164
      %v257 = vld [vmem:[%s256] ss:$8 sm:$0xf]
      %s258 = scalar_lea.vmem [#allocation2], 162
      %v259 = vld [vmem:[%s258] ss:$8 sm:$0xf]
      %v260 = vlog2.pop %v259
      %v261 = vmul.f32 %v260, 0.6931472
      %v262 = vmul.f32 %v257, %v261
      %v263 = vadd.f32 %v255, %v262
      %v264 = vsub.f32 1.0, %v257
      %v265 = vsub.f32 1.0, %v259
      %v266 = vlog2.pop %v265
      %v267 = vmul.f32 %v266, 0.6931472
      %v268 = vmul.f32 %v264, %v267
      %v269 = vadd.f32 %v263, %v268
      %v270 = vadd.f32 %v233, %v269
      %s271 = scalar_lea.vmem [#allocation2], 195
      %v272 = vld [vmem:[%s271] ss:$8 sm:$0xf]
      %s273 = scalar_lea.vmem [#allocation2], 192
      %v274 = vld [vmem:[%s273] ss:$8 sm:$0xf]
      %s275 = scalar_lea.vmem [#allocation2], 193
      %v276 = vld [vmem:[%s275] ss:$8 sm:$0xf]
      %v277 = vlog2.pop %v276
      %v278 = vmul.f32 %v277, 0.6931472
      %v279 = vlog2.pop %v272
      %v280 = vmul.f32 %v279, 0.6931472
      %v281 = vsub.f32 %v280, %v278
      %v282 = vlog2.pop %v274
      %v283 = vmul.f32 %v282, 0.6931472
      %v284 = vsub.f32 %v283, %v278
      %v285 = vsub.f32 %v274, 1.0
      %v286 = vmul.f32 %v285, %v281
      %v287 = vadd.f32 %v284, %v286
      %v288 = vmul.f32 %v274, %v281
      %v289 = vmul.f32 %v288, 1.442695
      %v290 = vpow.pop %v289
      %v291 = vsub.f32 %v287, %v290
      %v292 = vadd.f32 %v291, 0.0
      %s293 = scalar_lea.vmem [#allocation2], 196
      %v294 = vld [vmem:[%s293] ss:$8 sm:$0xf]
      %s295 = scalar_lea.vmem [#allocation2], 194
      %v296 = vld [vmem:[%s295] ss:$8 sm:$0xf]
      %v297 = vlog2.pop %v296
      %v298 = vmul.f32 %v297, 0.6931472
      %v299 = vmul.f32 %v294, %v298
      %v300 = vadd.f32 %v292, %v299
      %v301 = vsub.f32 1.0, %v294
      %v302 = vsub.f32 1.0, %v296
      %v303 = vlog2.pop %v302
      %v304 = vmul.f32 %v303, 0.6931472
      %v305 = vmul.f32 %v301, %v304
      %v306 = vadd.f32 %v300, %v305
      %v307 = vadd.f32 %v270, %v306
      %s308 = scalar_lea.vmem [#allocation2], 227
      %v309 = vld [vmem:[%s308] ss:$8 sm:$0xf]
      %s310 = scalar_lea.vmem [#allocation2], 224
      %v311 = vld [vmem:[%s310] ss:$8 sm:$0xf]
      %s312 = scalar_lea.vmem [#allocation2], 225
      %v313 = vld [vmem:[%s312] ss:$8 sm:$0xf]
      %v314 = vlog2.pop %v313
      %v315 = vmul.f32 %v314, 0.6931472
      %v316 = vlog2.pop %v309
      %v317 = vmul.f32 %v316, 0.6931472
      %v318 = vsub.f32 %v317, %v315
      %v319 = vlog2.pop %v311
      %v320 = vmul.f32 %v319, 0.6931472
      %v321 = vsub.f32 %v320, %v315
      %v322 = vsub.f32 %v311, 1.0
      %v323 = vmul.f32 %v322, %v318
      %v324 = vadd.f32 %v321, %v323
      %v325 = vmul.f32 %v311, %v318
      %v326 = vmul.f32 %v325, 1.442695
      %v327 = vpow.pop %v326
      %v328 = vsub.f32 %v324, %v327
      %v329 = vadd.f32 %v328, 0.0
      %s330 = scalar_lea.vmem [#allocation2], 228
      %v331 = vld [vmem:[%s330] ss:$8 sm:$0xf]
      %s332 = scalar_lea.vmem [#allocation2], 226
      %v333 = vld [vmem:[%s332] ss:$8 sm:$0xf]
      %v334 = vlog2.pop %v333
      %v335 = vmul.f32 %v334, 0.6931472
      %v336 = vmul.f32 %v331, %v335
      %v337 = vadd.f32 %v329, %v336
      %v338 = vsub.f32 1.0, %v331
      %v339 = vsub.f32 1.0, %v333
      %v340 = vlog2.pop %v339
      %v341 = vmul.f32 %v340, 0.6931472
      %v342 = vmul.f32 %v338, %v341
      %v343 = vadd.f32 %v337, %v342
      %v344 = vadd.f32 %v307, %v343
      %v345 = vld [vmem:[#allocation5] ss:$8 sm:$0xf]
      %v346 = vadd.f32 %v345, %v344
      %v347 = vlaneseq
      %vm348 = vcmp.ge.s32.totalorder %v347, 0
      %vm349 = vcmp.lt.s32.totalorder %v347, 512
      %vm350 = vmand %vm348, %vm349
      %351 = vst.msk [vmem:[#allocation5] ss:$8 sm:$0xf] %vm350, %v346
      %352 = vst.msk [vmem:[#allocation5] ss:$8 sm:$0x0] %vm350, %v346
    $region17: #{tpu_custom_call.1} parent=1 // pred_fallthru
      _
    %p353 = scmp.eq.s32.totalorder %s37, 0
    // Predicated region
    $region18: #{tpu_custom_call.1} parent=1 // pred_check
      %p354 = pneg %p353
    $region19: #{tpu_custom_call.1} parent=1 // pred_check_branch
      %356 = sbr.rel (%p354) target = $region21
    $region20: #{tpu_custom_call.1} parent=1 // pred_region
      %s357 = scalar_lea.vmem [#allocation2], 3
      %v358 = vld [vmem:[%s357] ss:$8 sm:$0xf]
      %v359 = vld [vmem:[#allocation2] ss:$8 sm:$0xf]
      %s360 = scalar_lea.vmem [#allocation2], 1
      %v361 = vld [vmem:[%s360] ss:$8 sm:$0xf]
      %v362 = vlog2.pop %v361
      %v363 = vmul.f32 %v362, 0.6931472
      %v364 = vlog2.pop %v358
      %v365 = vmul.f32 %v364, 0.6931472
      %v366 = vsub.f32 %v365, %v363
      %v367 = vlog2.pop %v359
      %v368 = vmul.f32 %v367, 0.6931472
      %v369 = vsub.f32 %v368, %v363
      %v370 = vsub.f32 %v359, 1.0
      %v371 = vmul.f32 %v370, %v366
      %v372 = vadd.f32 %v369, %v371
      %v373 = vmul.f32 %v359, %v366
      %v374 = vmul.f32 %v373, 1.442695
      %v375 = vpow.pop %v374
      %v376 = vsub.f32 %v372, %v375
      %v377 = vadd.f32 %v376, 0.0
      %s378 = scalar_lea.vmem [#allocation2], 4
      %v379 = vld [vmem:[%s378] ss:$8 sm:$0xf]
      %s380 = scalar_lea.vmem [#allocation2], 2
      %v381 = vld [vmem:[%s380] ss:$8 sm:$0xf]
      %v382 = vlog2.pop %v381
      %v383 = vmul.f32 %v382, 0.6931472
      %v384 = vmul.f32 %v379, %v383
      %v385 = vadd.f32 %v377, %v384
      %v386 = vsub.f32 1.0, %v379
      %v387 = vsub.f32 1.0, %v381
      %v388 = vlog2.pop %v387
      %v389 = vmul.f32 %v388, 0.6931472
      %v390 = vmul.f32 %v386, %v389
      %v391 = vadd.f32 %v385, %v390
      %v392 = vlaneseq
      %v393 = vand.u32 %v392, 127
      %v394 = vadd.s32 %v393, 128
      %v395 = vadd.s32 %v393, 256
      %v396 = vadd.s32 %v393, 384
      %vm397 = vcmp.lt.s32.totalorder %v393, 200
      %vm398 = vcmp.lt.s32.totalorder %v394, 200
      %vm399 = vcmp.lt.s32.totalorder %v395, 200
      %vm400 = vcmp.lt.s32.totalorder %v396, 200
      %v402 = vlaneseq
      %v403 = vshrl.u32 %v402, 7
      %v404 = vsub.s32 0, %v403
      %v405 = vrot.slane %v391, %v404
      %v406 = vlaneseq
      %v407 = vshrl.u32 %v406, 7
      %v408 = vsub.s32 1, %v407
      %v409 = vrot.slane %v391, %v408
      %v410 = vlaneseq
      %v411 = vshrl.u32 %v410, 7
      %v412 = vsub.s32 2, %v411
      %v413 = vrot.slane %v391, %v412
      %v414 = vlaneseq
      %v415 = vshrl.u32 %v414, 7
      %v416 = vsub.s32 3, %v415
      %v417 = vrot.slane %v391, %v416
      %v422 = vsel %vm397, %v405, 0.0
      %v423 = vsel %vm398, %v409, 0.0
      %v424 = vsel %vm399, %v413, 0.0
      %v425 = vsel %vm400, %v417, 0.0
      %v426 = vadd.f32 %v422, 0.0
      %v427 = vadd.f32 %v423, 0.0
      %v428 = vadd.f32 %v424, 0.0
      %v429 = vadd.f32 %v425, 0.0
      %v430 = vld [vmem:[#allocation5] ss:$8 sm:$0xf]
      %v435 = vcombine.low %v426, %v427
      %v436 = vcombine.low %v428, %v429
      %v438 = vunpack.c.l.s4 1966171168
      %v439 = vunpack.c.0.s8 %v438
      %v440 = vlaneseq
      %v441 = vshrl.u32 %v440, 7
      %v442 = vsub.s32 %v439, %v441
      %v443 = vrot.slane %v435, %v442
      %v445 = vunpack.c.l.s4 1966171168
      %v446 = vunpack.c.0.s8 %v445
      %v447 = vlaneseq
      %v448 = vshrl.u32 %v447, 7
      %v449 = vsub.s32 %v446, %v448
      %v450 = vrot.slane %v436, %v449
      %v451 = vcombine.low %v443, %v450
      %v453 = vunpack.c.l.s4 1966171168
      %v454 = vunpack.c.0.s8 %v453
      %v455 = vlaneseq
      %v456 = vshrl.u32 %v455, 7
      %v457 = vsub.s32 %v454, %v456
      %v458 = vrot.slane %v451, %v457
      %v460 = vadd.f32 %v430, %v458
      %v461 = vlaneseq
      %vm462 = vcmp.ge.s32.totalorder %v461, 0
      %vm463 = vcmp.lt.s32.totalorder %v461, 512
      %vm464 = vmand %vm462, %vm463
      %465 = vst.msk [vmem:[#allocation5] ss:$8 sm:$0xf] %vm464, %v460
      %466 = vst.msk [vmem:[#allocation5] ss:$8 sm:$0x0] %vm464, %v460
    $region21: #{tpu_custom_call.1} parent=1 // pred_fallthru
      _
    // Predicated region
    $region22: #{tpu_custom_call.1} parent=1 // pred_check
      _
    $region23: #{tpu_custom_call.1} parent=1 // pred_check_branch
      %468 = sbr.rel (0) target = $region25
    $region24: #{tpu_custom_call.1} parent=1 // pred_region
      %s470 = ssub.s32 512, 512
      %471 = vsyncadd [#allocation4], %s470
      %s473 = sshll.u32 [#allocation5], 4
      %s474 = int_to_ptr.vmem [resolvable:$true] %s473
      %476 = dma.vmem_to_hbm [thread:$0]  %s474, 512, %s1, [#allocation4]
    $region25: #{tpu_custom_call.1} parent=1 // pred_fallthru
      _
    // Predicated region
    $region26: #{tpu_custom_call.1} parent=1 // pred_check
      _
    $region27: #{tpu_custom_call.1} parent=1 // pred_check_branch
      %478 = sbr.rel (0) target = $region29
    $region28: #{tpu_custom_call.1} parent=1 // pred_region
      %479 = dma.done [#allocation4], 512
    $region29: #{tpu_custom_call.1} parent=1 // pred_fallthru
      _
    %480 = vsyncpa [#allocation3], 1
    %481 = vsyncpa [#allocation4], 1

</llo_original>
